<compile_context>
chip_gen: v7x
topology: tpu7x:2x2x1
jax: 0.10.0
libtpu: 0.0.40
codegen_flags: <defaults>
</compile_context>

<pallas_src>
import functools

import jax
import jax.numpy as jnp
from jax import lax
from jax.experimental import pallas as pl
from jax.experimental.pallas import tpu as pltpu

LANES = 128
SUBLANES = 8
MAX_BLOCK_ROWS = 8192            # (8192,128) f32 block = 4 MiB
NUM_PARTIALS = 2                 # leading "parallel" axis -> both TensorCores on v7x
VMEM_STREAM_BUDGET = 24 << 20    # double-buffered streaming footprint target
VMEM_LIMIT_BYTES = 32 << 20      # explicit scoped-VMEM limit (safe on v5e/v6e/v7x)


def _round_up(x, m):
    return ((x + m - 1) // m) * m


def _sublane_granule(*dtypes):
    """Sublane packing granule: 8 for f32, 16 for bf16, 32 for 8-bit dtypes."""
    g = SUBLANES
    for dt in dtypes:
        itemsize = jnp.dtype(dt).itemsize
        g = max(g, (4 * SUBLANES) // max(itemsize, 1))
    return g


def _pick_block_rows(m_rows, bytes_per_row, granule, max_block_rows):
    """Largest block-row count that fits the double-buffered VMEM budget."""
    rows = min(max_block_rows, VMEM_STREAM_BUDGET // (2 * bytes_per_row))
    rows = max(granule, (rows // granule) * granule)
    rows = min(rows, _round_up(m_rows, granule))
    return int(rows)


def _focal_terms(x, t, gamma):
    """Elementwise (1 - pt)^gamma * BCE-with-logits in f32 (no alpha)."""
    bce = jnp.maximum(x, 0.0) - x * t + jnp.log1p(jnp.exp(-jnp.abs(x)))
    pt = jnp.exp(-bce)
    one_minus_pt = 1.0 - pt
    g = float(gamma)
    if g == int(g) and g >= 0:
        mod = lax.integer_pow(one_minus_pt, int(g))       # gamma=2 -> single VPU mul
    else:
        # clamp avoids NaN from exp(g*log(negative)) when pt rounds slightly > 1
        mod = jnp.power(jnp.maximum(one_minus_pt, 0.0), g)
    return mod * bce


def _block_partial_sum(fl, block_rows):
    # Sublane-group partial sums: pure VPU vreg adds, one (8,128) add into o_ref.
    return jnp.sum(fl.reshape(block_rows // SUBLANES, SUBLANES, LANES), axis=0)


def _focal_sum_kernel(x_ref, t_ref, o_ref, *, gamma, n_valid, block_rows,
                      blocks_per_part, needs_mask):
    c = pl.program_id(0)   # partial-sum / core index
    b = pl.program_id(1)   # block index within this partial

    @pl.when(b == 0)
    def _():
        o_ref[...] = jnp.zeros_like(o_ref)

    x = x_ref[...].astype(jnp.float32)
    t = t_ref[...].astype(jnp.float32)
    fl = _focal_terms(x, t, gamma)

    if not needs_mask:
        o_ref[...] += _block_partial_sum(fl, block_rows)
    else:
        # TODO(synk): index math is int32; tensors with >= 2**31 elements overflow.
        blk_elems = block_rows * LANES
        block_id = c * blocks_per_part + b
        block_start = block_id * blk_elems
        is_full = (block_start + blk_elems) <= n_valid

        @pl.when(is_full)
        def _():
            # Interior blocks: no mask math at all.
            o_ref[...] += _block_partial_sum(fl, block_rows)

        @pl.when(jnp.logical_not(is_full))
        def _():
            # Ragged tail / duplicated block: per-element validity mask.
            row = lax.broadcasted_iota(jnp.int32, (block_rows, LANES), 0)
            lane = lax.broadcasted_iota(jnp.int32, (block_rows, LANES), 1)
            gidx = block_start + row * LANES + lane
            masked = jnp.where(gidx < n_valid, fl, 0.0)   # NaN-safe for OOB garbage
            o_ref[...] += _block_partial_sum(masked, block_rows)


def _focal_elemwise_kernel(x_ref, t_ref, o_ref, *, alpha, gamma):
    x = x_ref[...].astype(jnp.float32)
    t = t_ref[...].astype(jnp.float32)
    o_ref[...] = (alpha * _focal_terms(x, t, gamma)).astype(o_ref.dtype)


def focal_loss(inputs, targets, alpha=1.0, gamma=2.0, reduction="mean", *,
               max_block_rows=MAX_BLOCK_ROWS):
    """Pallas TPU focal loss. `inputs` are logits, `targets` in [0, 1]."""
    assert inputs.shape == targets.shape
    n_valid = int(inputs.size)
    orig_shape = inputs.shape
    orig_dtype = inputs.dtype
    alpha = float(alpha)
    gamma = float(gamma)

    # Flatten row-major; pad only to lane (128) granularity. Ragged sublane rows
    # (m_rows not a multiple of 8 / block_rows) are handled in-kernel via the
    # validity mask (sum path) and masked partial writeback ('none' path).
    fx = inputs.reshape(-1)
    ft = targets.reshape(-1)
    pad = (-n_valid) % LANES
    if pad:
        fx = jnp.pad(fx, (0, pad))
        ft = jnp.pad(ft, (0, pad))
    m_rows = (n_valid + pad) // LANES
    x2 = fx.reshape(m_rows, LANES)
    t2 = ft.reshape(m_rows, LANES)

    granule = _sublane_granule(inputs.dtype, targets.dtype)

    if reduction == "none":
        bytes_per_row = LANES * (jnp.dtype(inputs.dtype).itemsize
                                 + jnp.dtype(targets.dtype).itemsize
                                 + jnp.dtype(orig_dtype).itemsize)
        block_rows = _pick_block_rows(m_rows, bytes_per_row, granule, max_block_rows)
        num_blocks = pl.cdiv(m_rows, block_rows)
        kernel = functools.partial(_focal_elemwise_kernel, alpha=alpha, gamma=gamma)
        out = pl.pallas_call(
            kernel,
            out_shape=jax.ShapeDtypeStruct((m_rows, LANES), orig_dtype),
            grid_spec=pltpu.PrefetchScalarGridSpec(
                num_scalar_prefetch=0,
                grid=(num_blocks,),
                in_specs=[
                    pl.BlockSpec((block_rows, LANES), lambda i: (i, 0)),
                    pl.BlockSpec((block_rows, LANES), lambda i: (i, 0)),
                ],
                out_specs=pl.BlockSpec((block_rows, LANES), lambda i: (i, 0)),
            ),
            compiler_params=pltpu.CompilerParams(
                dimension_semantics=("parallel",),
                vmem_limit_bytes=VMEM_LIMIT_BYTES),
        )(x2, t2)
        return out.reshape(-1)[:n_valid].reshape(orig_shape)

    if reduction not in ("mean", "sum"):
        raise ValueError(f"unsupported reduction: {reduction!r}")

    # 'mean' / 'sum' path: NUM_PARTIALS parallel (8, 128) accumulators.
    bytes_per_row = LANES * (jnp.dtype(inputs.dtype).itemsize
                             + jnp.dtype(targets.dtype).itemsize)
    block_rows = _pick_block_rows(m_rows, bytes_per_row, granule, max_block_rows)
    num_blocks = pl.cdiv(m_rows, block_rows)
    blocks_per_part = pl.cdiv(num_blocks, NUM_PARTIALS)
    # Compile the masked branch only if some block could be ragged/padded/duplicated;
    # the per-block pl.when keeps interior blocks mask-free at runtime regardless.
    needs_mask = (num_blocks * block_rows * LANES != n_valid
                  or blocks_per_part * NUM_PARTIALS != num_blocks)

    kernel = functools.partial(
        _focal_sum_kernel, gamma=gamma, n_valid=n_valid, block_rows=block_rows,
        blocks_per_part=blocks_per_part, needs_mask=needs_mask)

    def in_map(c, b):
        # Clamp duplicated/overhanging block ids; in-kernel masking zeroes them.
        return (jnp.minimum(c * blocks_per_part + b, num_blocks - 1), 0)

    partials = pl.pallas_call(
        kernel,
        out_shape=jax.ShapeDtypeStruct((NUM_PARTIALS * SUBLANES, LANES), jnp.float32),
        grid_spec=pltpu.PrefetchScalarGridSpec(
            num_scalar_prefetch=0,
            grid=(NUM_PARTIALS, blocks_per_part),
            in_specs=[
                pl.BlockSpec((block_rows, LANES), in_map),
                pl.BlockSpec((block_rows, LANES), in_map),
            ],
            # each partial owns its own resident (8,128) accumulator block
            out_specs=pl.BlockSpec((SUBLANES, LANES), lambda c, b: (c, 0)),
        ),
        compiler_params=pltpu.CompilerParams(
            dimension_semantics=("parallel", "arbitrary"),
            vmem_limit_bytes=VMEM_LIMIT_BYTES),
    )(x2, t2)

    total = alpha * jnp.sum(partials)   # alpha applied once, not per element
    if reduction == "mean":
        return total / jnp.float32(n_valid)
    return total


def _focal_loss_ref(inputs, targets, alpha=1.0, gamma=2.0, reduction="mean"):
    x = inputs.astype(jnp.float32)
    t = targets.astype(jnp.float32)
    bce = jnp.maximum(x, 0.0) - x * t + jnp.log1p(jnp.exp(-jnp.abs(x)))
    pt = jnp.exp(-bce)
    fl = alpha * (1.0 - pt) ** gamma * bce
    if reduction == "mean":
        return fl.mean()
    elif reduction == "sum":
        return fl.sum()
    return fl


if __name__ == "__main__":
    root = jax.random.PRNGKey(0)

    def make_inputs(shape, dtype, salt):
        k1, k2 = jax.random.split(jax.random.fold_in(root, salt))
        logits = (jax.random.normal(k1, shape, dtype=jnp.float32) * 2.0).astype(dtype)
        targets = (jax.random.uniform(k2, shape) > 0.5).astype(dtype)
        return logits, targets

    def check(name, shape, dtype, reduction, alpha, gamma, salt,
              max_block_rows=MAX_BLOCK_ROWS, rtol=1e-5, atol=1e-5):
        logits, targets = make_inputs(shape, dtype, salt)
        got = jax.block_until_ready(
            focal_loss(logits, targets, alpha, gamma, reduction,
                       max_block_rows=max_block_rows))
        want = _focal_loss_ref(logits, targets, alpha, gamma, reduction)
        assert jnp.allclose(got, want, rtol=rtol, atol=atol), (name, got, want)

    # 1) Small NCHW-like logits map, lane-aligned, single block.
    check("aligned_mean", (2, 4, 16, 16), jnp.float32, "mean", 1.0, 2.0, salt=1)
    check("aligned_none", (2, 4, 16, 16), jnp.float32, "none", 1.0, 2.0, salt=1)

    # 2) Non-lane-aligned shape: exercises lane padding + ragged sublane rows.
    check("ragged_sum", (2, 3, 15, 15), jnp.float32, "sum", 0.25, 2.0, salt=2)
    check("ragged_none", (2, 3, 15, 15), jnp.float32, "none", 0.25, 2.0, salt=2)

    # 3) Forced tiny blocks: multi-block accumulation per partition, odd num_blocks
    #    (duplicated clamped block), ragged last block, masked branch + pl.when gate.
    check("multiblock_mean", (2, 4, 17, 17), jnp.float32, "mean", 1.0, 3.0, salt=3,
          max_block_rows=8)
    check("multiblock_none", (2, 4, 17, 17), jnp.float32, "none", 1.0, 3.0, salt=3,
          max_block_rows=8)

    # 4) bf16 inputs: exercises dtype-aware sublane granule and in-kernel upcast.
    check("bf16_mean", (2, 4, 16, 16), jnp.bfloat16, "mean", 1.0, 2.0, salt=4)

    print("KERNEL_OK")
</pallas_src>

<mosaic_0001>
module attributes {stable_mosaic.version = 11 : i64} {
  func.func @_focal_sum_kernel(%arg0: i32, %arg1: i32, %arg2: memref<16x128xf32, #tpu.memory_space<vmem>>, %arg3: memref<16x128xf32, #tpu.memory_space<vmem>>, %arg4: memref<8x128xf32, #tpu.memory_space<vmem>>) attributes {dimension_semantics = [#tpu.dimension_semantics<parallel>, #tpu.dimension_semantics<arbitrary>], iteration_bounds = array<i64: 2, 1>, scalar_prefetch = 0 : i64, scratch_operands = 0 : i64, tpu.core_type = #tpu.core_type<tc>, window_params = [{transform_indices = @transform_0, window_bounds = array<i64: 16, 128>}, {transform_indices = @transform_1, window_bounds = array<i64: 16, 128>}, {transform_indices = @transform_2, window_bounds = array<i64: 8, 128>}]} {
    %c0_i32 = arith.constant 0 : i32
    %0 = arith.cmpi eq, %arg1, %c0_i32 : i32
    %1 = arith.extui %0 : i1 to i32
    %c0_i32_0 = arith.constant 0 : i32
    %2 = arith.cmpi ne, %1, %c0_i32_0 : i32
    scf.if %2 {
      %cst_11 = arith.constant 0.000000e+00 : f32
      %32 = vector.broadcast %cst_11 : f32 to vector<8x128xf32>
      %c0_12 = arith.constant 0 : index
      %c0_13 = arith.constant 0 : index
      %33 = vector.load %arg4[%c0_12, %c0_13] : memref<8x128xf32, #tpu.memory_space<vmem>>, vector<8x128xf32>
      tpu.vector_store %arg4[%c0_12, %c0_13], %32 {strides = array<i32>} : memref<8x128xf32, #tpu.memory_space<vmem>>, vector<8x128xf32>,
    } else {
    }
    %c0 = arith.constant 0 : index
    %c0_1 = arith.constant 0 : index
    %3 = vector.load %arg2[%c0, %c0_1] : memref<16x128xf32, #tpu.memory_space<vmem>>, vector<16x128xf32>
    %c0_2 = arith.constant 0 : index
    %c0_3 = arith.constant 0 : index
    %4 = vector.load %arg3[%c0_2, %c0_3] : memref<16x128xf32, #tpu.memory_space<vmem>>, vector<16x128xf32>
    %cst = arith.constant 0.000000e+00 : f32
    %5 = vector.broadcast %cst : f32 to vector<16x128xf32>
    %6 = arith.maximumf %3, %5 : vector<16x128xf32>
    %7 = arith.mulf %3, %4 : vector<16x128xf32>
    %8 = arith.subf %6, %7 : vector<16x128xf32>
    %9 = math.absf %3 : vector<16x128xf32>
    %cst_4 = arith.constant 0.000000e+00 : f32
    %10 = vector.broadcast %cst_4 : f32 to vector<16x128xf32>
    %11 = arith.subf %10, %9 : vector<16x128xf32>
    %12 = math.exp %11 : vector<16x128xf32>
    %13 = math.log1p %12 : vector<16x128xf32>
    %14 = arith.addf %8, %13 : vector<16x128xf32>
    %cst_5 = arith.constant 0.000000e+00 : f32
    %15 = vector.broadcast %cst_5 : f32 to vector<16x128xf32>
    %16 = arith.subf %15, %14 : vector<16x128xf32>
    %17 = math.exp %16 : vector<16x128xf32>
    %cst_6 = arith.constant 1.000000e+00 : f32
    %18 = vector.broadcast %cst_6 : f32 to vector<16x128xf32>
    %19 = arith.subf %18, %17 : vector<16x128xf32>
    %20 = arith.mulf %19, %19 : vector<16x128xf32>
    %21 = arith.mulf %20, %14 : vector<16x128xf32>
    %c1_i32 = arith.constant 1 : i32
    %22 = arith.muli %arg0, %c1_i32 : i32
    %23 = arith.addi %22, %arg1 : i32
    %c2048_i32 = arith.constant 2048 : i32
    %24 = arith.muli %23, %c2048_i32 : i32
    %c2048_i32_7 = arith.constant 2048 : i32
    %25 = arith.addi %24, %c2048_i32_7 : i32
    %c2048_i32_8 = arith.constant 2048 : i32
    %26 = arith.cmpi sle, %25, %c2048_i32_8 : i32
    %27 = arith.extui %26 : i1 to i32
    %c0_i32_9 = arith.constant 0 : i32
    %28 = arith.cmpi ne, %27, %c0_i32_9 : i32
    scf.if %28 {
      %c0_11 = arith.constant 0 : index
      %c0_12 = arith.constant 0 : index
      %32 = vector.load %arg4[%c0_11, %c0_12] : memref<8x128xf32, #tpu.memory_space<vmem>>, vector<8x128xf32>
      %33 = vector.shape_cast %21 : vector<16x128xf32> to vector<2x8x128xf32>
      %cst_13 = arith.constant dense<0.000000e+00> : vector<8x128xf32>
      %34 = vector.multi_reduction <add>, %33, %cst_13 [0] : vector<2x8x128xf32> to vector<8x128xf32>
      %35 = arith.addf %32, %34 : vector<8x128xf32>
      %c0_14 = arith.constant 0 : index
      %c0_15 = arith.constant 0 : index
      %36 = vector.load %arg4[%c0_14, %c0_15] : memref<8x128xf32, #tpu.memory_space<vmem>>, vector<8x128xf32>
      tpu.vector_store %arg4[%c0_14, %c0_15], %35 {strides = array<i32>} : memref<8x128xf32, #tpu.memory_space<vmem>>, vector<8x128xf32>,
    } else {
    }
    %true = arith.constant true
    %29 = arith.xori %26, %true : i1
    %30 = arith.extui %29 : i1 to i32
    %c0_i32_10 = arith.constant 0 : i32
    %31 = arith.cmpi ne, %30, %c0_i32_10 : i32
    scf.if %31 {
      %32 = tpu.iota {dimensions = array<i32: 0>} : vector<16x128xi32>
      %33 = tpu.iota {dimensions = array<i32: 1>} : vector<16x128xi32>
      %c128_i32 = arith.constant 128 : i32
      %34 = vector.broadcast %c128_i32 : i32 to vector<16x128xi32>
      %35 = arith.muli %32, %34 : vector<16x128xi32>
      %36 = vector.broadcast %24 : i32 to vector<16x128xi32>
      %37 = arith.addi %36, %35 : vector<16x128xi32>
      %38 = arith.addi %37, %33 : vector<16x128xi32>
      %c2048_i32_11 = arith.constant 2048 : i32
      %39 = vector.broadcast %c2048_i32_11 : i32 to vector<16x128xi32>
      %40 = arith.cmpi slt, %38, %39 : vector<16x128xi32>
      %cst_12 = arith.constant 0.000000e+00 : f32
      %41 = vector.broadcast %cst_12 : f32 to vector<16x128xf32>
      %42 = arith.select %40, %21, %41 : vector<16x128xi1>, vector<16x128xf32>
      %c0_13 = arith.constant 0 : index
      %c0_14 = arith.constant 0 : index
      %43 = vector.load %arg4[%c0_13, %c0_14] : memref<8x128xf32, #tpu.memory_space<vmem>>, vector<8x128xf32>
      %44 = vector.shape_cast %42 : vector<16x128xf32> to vector<2x8x128xf32>
      %cst_15 = arith.constant dense<0.000000e+00> : vector<8x128xf32>
      %45 = vector.multi_reduction <add>, %44, %cst_15 [0] : vector<2x8x128xf32> to vector<8x128xf32>
      %46 = arith.addf %43, %45 : vector<8x128xf32>
      %c0_16 = arith.constant 0 : index
      %c0_17 = arith.constant 0 : index
      %47 = vector.load %arg4[%c0_16, %c0_17] : memref<8x128xf32, #tpu.memory_space<vmem>>, vector<8x128xf32>
      tpu.vector_store %arg4[%c0_16, %c0_17], %46 {strides = array<i32>} : memref<8x128xf32, #tpu.memory_space<vmem>>, vector<8x128xf32>,
    } else {
    }
    return
  }
  func.func @transform_0(%arg0: i32, %arg1: i32) -> (i32, i32) {
    %c1_i32 = arith.constant 1 : i32
    %0 = arith.muli %arg0, %c1_i32 : i32
    %1 = arith.addi %0, %arg1 : i32
    %c0_i32 = arith.constant 0 : i32
    %2 = arith.minsi %1, %c0_i32 : i32
    %c0_i32_0 = arith.constant 0 : i32
    %c0_i32_1 = arith.constant 0 : i32
    return %2, %c0_i32_0 : i32, i32
  }
  func.func @transform_1(%arg0: i32, %arg1: i32) -> (i32, i32) {
    %c1_i32 = arith.constant 1 : i32
    %0 = arith.muli %arg0, %c1_i32 : i32
    %1 = arith.addi %0, %arg1 : i32
    %c0_i32 = arith.constant 0 : i32
    %2 = arith.minsi %1, %c0_i32 : i32
    %c0_i32_0 = arith.constant 0 : i32
    %c0_i32_1 = arith.constant 0 : i32
    return %2, %c0_i32_0 : i32, i32
  }
  func.func @transform_2(%arg0: i32, %arg1: i32) -> (i32, i32) {
    %c0_i32 = arith.constant 0 : i32
    %c0_i32_0 = arith.constant 0 : i32
    return %arg0, %c0_i32 : i32, i32
  }
}

</mosaic_0001>

<llo_original>
// kernel: tpu_custom_call.1
$region0: #{tpu_custom_call.1}
  #allocation0 [shape = 'u32[]', space=smem, size = 0x4, offset = 0x4, fixed_abs, tag = 'smem constant byte address 0x4 - core index']
  #allocation1 [shape = 'u32[144,128]{1,0:T(1,128)}', space=vmem, size = 0x12000, scoped, tag = 'internal scratch']
  %s0 = inlined_call_operand.hbm [shape: f32[16,128], index: 0, kind: input, shape index: {}]
  %s1 = inlined_call_operand.hbm [shape: f32[16,128], index: 1, kind: input, shape index: {}]
  %s2 = inlined_call_operand.hbm [shape: f32[16,128], index: 2, kind: output, shape index: {}]
  %s3 = sld [smem:[#allocation0]]
  $region61: #{tpu_custom_call.1} parent=0
    _
  %s5 = ssub.s32 1, %s3
  %s6 = scalar_select 0, %s5, %s3
  $region1: #{tpu_custom_call.1} parent=0
    #allocation2 [shape = 'u8[16384]{0}', space=vmem, size = 0x4000, scoped, tag = 'input window, operand 0']
    #allocation3 [shape = 's32[2]{0}', space=sflag, size = 0x8, scoped, tag = 'scoped memory for tpu_custom_call.1']
    #allocation4 [shape = 's32[2]{0}', space=sflag, size = 0x8, scoped, tag = 'scoped memory for tpu_custom_call.1']
    #allocation5 [shape = 'u8[16384]{0}', space=vmem, size = 0x4000, scoped, tag = 'input window, operand 1']
    #allocation6 [shape = 's32[2]{0}', space=sflag, size = 0x8, scoped, tag = 'scoped memory for tpu_custom_call.1']
    #allocation7 [shape = 'u8[8192]{0}', space=vmem, size = 0x2000, scoped, tag = 'output window, operand 0']
    %7 = vsyncpa [#allocation3], 0
    %s8 = scalar_lea.sflag [#allocation3], 1
    %9 = vsyncpa %s8, 0
    %10 = vsyncpa [#allocation6], 0
    %s11 = scalar_lea.sflag [#allocation6], 1
    %12 = vsyncpa %s11, 0
    %13 = vsyncpa [#allocation4], 0
    %s14 = scalar_lea.sflag [#allocation4], 1
    %15 = vsyncpa %s14, 0
    loop: start=0, step=1, limit=4
    $region2: #{tpu_custom_call.1} parent=1 // loop_pre_header
      _
    $region3: #{tpu_custom_call.1} parent=1 // loop_header
      %s17 = sphi 0, %s21
      %p18 = scmp.ge.s32.totalorder %s17, 4
      %s24 = sphi 0, %s36
      %s25 = sphi 0, %s32
      %s26 = sphi 0, %s24
      %s27 = sphi 0, %s25
      %s28 = sphi 0, %s26
      %s29 = sphi 0, %s27
      %s45 = sphi 0, %s47
      %s48 = sphi 0, %s45
      %s49 = sphi 0, %s48
      %s65 = sphi 0, %s49
      %s77 = sphi 0, %s79
      %s80 = sphi 0, %s77
      %s81 = sphi 0, %s80
      %s97 = sphi 0, %s81
      %s103 = sphi 0, %s105
      %s106 = sphi 0, %s103
      %s107 = sphi 0, %s106
      %s123 = sphi 0, %s107
    $region4: #{tpu_custom_call.1} parent=1 // loop_header_branch
      %20 = sbr.rel (%p18) target = $region8
    $region5: #{tpu_custom_call.1} parent=1 // loop_body
      %s22 = ssub.s32 %s17, 1
      %s23 = ssub.s32 %s17, 2
      %s30 = sadd.s32 1, %s25
      %p31 = scmp.ge.s32.totalorder %s30, 1
      %s32 = scalar_select %p31, 0, %s30
      %s33 = sadd.s32 1, %s24
      %s34 = scalar_select %p31, %s33, %s24
      %p35 = scmp.ge.s32.totalorder %s34, 2
      %s36 = scalar_select %p35, 0, %s34
      %s37 = sadd.s32 %s24, %s25
      %p38 = scmp.lt.s32.totalorder %s37, 0
      %s39 = scalar_select %p38, %s37, 0
      %s40 = sadd.s32 %s36, %s32
      %p41 = scmp.lt.s32.totalorder %s40, 0
      %s42 = scalar_select %p41, %s40, 0
      %s43 = ssub.s32 %s39, %s42
      %p44 = scmp.eq.s32.totalorder %s43, 0
      %s46 = sadd.s32 %s45, 1
      %s47 = scalar_select %p44, %s45, %s46
      %p50 = pneg %p44
      %p51 = scmp.eq.s32.totalorder %s17, 1
      %p52 = por %p50, %p51
      %p53 = scmp.ne.s32.totalorder %s45, %s48
      %p54 = scmp.eq.s32.totalorder %s17, 0
      %p55 = por %p53, %p54
      %p56 = scmp.ne.s32.totalorder %s45, %s48
      %p57 = scmp.eq.s32.totalorder %s22, 1
      %p58 = por %p56, %p57
      %p59 = scmp.ne.s32.totalorder %s48, %s49
      %p60 = scmp.eq.s32.totalorder %s22, 0
      %p61 = por %p59, %p60
      %p62 = scmp.ne.s32.totalorder %s48, %s49
      %p63 = scmp.eq.s32.totalorder %s23, 1
      %p64 = por %p62, %p63
      %p66 = scmp.ne.s32.totalorder %s49, %s65
      %p67 = scmp.eq.s32.totalorder %s23, 0
      %p68 = por %p66, %p67
      %s69 = sadd.s32 %s24, %s25
      %p70 = scmp.lt.s32.totalorder %s69, 0
      %s71 = scalar_select %p70, %s69, 0
      %s72 = sadd.s32 %s36, %s32
      %p73 = scmp.lt.s32.totalorder %s72, 0
      %s74 = scalar_select %p73, %s72, 0
      %s75 = ssub.s32 %s71, %s74
      %p76 = scmp.eq.s32.totalorder %s75, 0
      %s78 = sadd.s32 %s77, 1
      %s79 = scalar_select %p76, %s77, %s78
      %p82 = pneg %p76
      %p83 = scmp.eq.s32.totalorder %s17, 1
      %p84 = por %p82, %p83
      %p85 = scmp.ne.s32.totalorder %s77, %s80
      %p86 = scmp.eq.s32.totalorder %s17, 0
      %p87 = por %p85, %p86
      %p88 = scmp.ne.s32.totalorder %s77, %s80
      %p89 = scmp.eq.s32.totalorder %s22, 1
      %p90 = por %p88, %p89
      %p91 = scmp.ne.s32.totalorder %s80, %s81
      %p92 = scmp.eq.s32.totalorder %s22, 0
      %p93 = por %p91, %p92
      %p94 = scmp.ne.s32.totalorder %s80, %s81
      %p95 = scmp.eq.s32.totalorder %s23, 1
      %p96 = por %p94, %p95
      %p98 = scmp.ne.s32.totalorder %s81, %s97
      %p99 = scmp.eq.s32.totalorder %s23, 0
      %p100 = por %p98, %p99
      %s101 = ssub.s32 %s24, %s36
      %p102 = scmp.eq.s32.totalorder %s101, 0
      %s104 = sadd.s32 %s103, 1
      %s105 = scalar_select %p102, %s103, %s104
      %p108 = pneg %p102
      %p109 = scmp.eq.s32.totalorder %s17, 1
      %p110 = por %p108, %p109
      %p111 = scmp.ne.s32.totalorder %s103, %s106
      %p112 = scmp.eq.s32.totalorder %s17, 0
      %p113 = por %p111, %p112
      %p114 = scmp.ne.s32.totalorder %s103, %s106
      %p115 = scmp.eq.s32.totalorder %s22, 1
      %p116 = por %p114, %p115
      %p117 = scmp.ne.s32.totalorder %s106, %s107
      %p118 = scmp.eq.s32.totalorder %s22, 0
      %p119 = por %p117, %p118
      %p120 = scmp.ne.s32.totalorder %s106, %s107
      %p121 = scmp.eq.s32.totalorder %s23, 1
      %p122 = por %p120, %p121
      %p124 = scmp.ne.s32.totalorder %s107, %s123
      %p125 = scmp.eq.s32.totalorder %s23, 0
      %p126 = por %p124, %p125
      %p127 = scmp.le.s32.totalorder 1, %s17
      %p128 = scmp.lt.s32.totalorder %s17, 3
      %p129 = pnand %p127, %p128
      %p130 = pneg %p129
      // Predicated region
      $region9: #{tpu_custom_call.1} parent=5 // pred_check
        _
      $region10: #{tpu_custom_call.1} parent=5 // pred_check_branch
        %132 = sbr.rel (%p129) target = $region12
      $region11: #{tpu_custom_call.1} parent=5 // pred_region
        %s133 = ssub.s32 %s17, 1
      $region12: #{tpu_custom_call.1} parent=5 // pred_fallthru
        _
      %p134 = scmp.lt.s32.totalorder %s17, 2
      // Predicated region
      $region13: #{tpu_custom_call.1} parent=5 // pred_check
        %p135 = pneg %p134
      $region14: #{tpu_custom_call.1} parent=5 // pred_check_branch
        %137 = sbr.rel (%p135) target = $region16
      $region15: #{tpu_custom_call.1} parent=5 // pred_region
        // Predicated region
        $region17: #{tpu_custom_call.1} parent=15 // pred_check
          %p138 = pneg %p55
        $region18: #{tpu_custom_call.1} parent=15 // pred_check_branch
          %140 = sbr.rel (%p138) target = $region20
        $region19: #{tpu_custom_call.1} parent=15 // pred_region
          %s141 = sand.u32 %s45, 1
          %s142 = scalar_lea.sflag [#allocation3], %s141
          %s143 = sand.u32 %s45, 1
          %s144 = smul.addr %s143, 16
          %s145 = scalar_lea.vmem [#allocation2], %s144
          %s146 = sadd.s32 %s24, %s25
          %p147 = scmp.lt.s32.totalorder %s146, 0
          %s148 = scalar_select %p147, %s146, 0
          %s149 = smul.u32 2, %s148
          %s151 = ssub.s32 256, 256
          %152 = vsyncadd %s142, %s151
          %s153 = smul.addr %s149, 128
          %s154 = scalar_lea.hbm %s0, %s153
          %s155 = sshll.u32 %s145, 4
          %s156 = int_to_ptr.vmem [resolvable:$true] %s155
          %161 = dma.hbm_to_vmem [thread:$0]  %s154, 256, %s156, %s142, 128, 128, 8
        $region20: #{tpu_custom_call.1} parent=15 // pred_fallthru
          _
        // Predicated region
        $region21: #{tpu_custom_call.1} parent=15 // pred_check
          %p162 = pneg %p87
        $region22: #{tpu_custom_call.1} parent=15 // pred_check_branch
          %164 = sbr.rel (%p162) target = $region24
        $region23: #{tpu_custom_call.1} parent=15 // pred_region
          %s165 = sand.u32 %s77, 1
          %s166 = scalar_lea.sflag [#allocation6], %s165
          %s167 = sand.u32 %s77, 1
          %s168 = smul.addr %s167, 16
          %s169 = scalar_lea.vmem [#allocation5], %s168
          %s170 = sadd.s32 %s24, %s25
          %p171 = scmp.lt.s32.totalorder %s170, 0
          %s172 = scalar_select %p171, %s170, 0
          %s173 = smul.u32 2, %s172
          %s175 = ssub.s32 256, 256
          %176 = vsyncadd %s166, %s175
          %s177 = smul.addr %s173, 128
          %s178 = scalar_lea.hbm %s1, %s177
          %s179 = sshll.u32 %s169, 4
          %s180 = int_to_ptr.vmem [resolvable:$true] %s179
          %185 = dma.hbm_to_vmem [thread:$0]  %s178, 256, %s180, %s166, 128, 128, 8
        $region24: #{tpu_custom_call.1} parent=15 // pred_fallthru
          _
      $region16: #{tpu_custom_call.1} parent=5 // pred_fallthru
        _
      %p186 = scmp.le.s32.totalorder 1, %s17
      %p187 = scmp.lt.s32.totalorder %s17, 3
      %p188 = pnand %p186, %p187
      %p189 = pneg %p188
      // Predicated region
      $region25: #{tpu_custom_call.1} parent=5 // pred_check
        _
      $region26: #{tpu_custom_call.1} parent=5 // pred_check_branch
        %191 = sbr.rel (%p188) target = $region28
      $region27: #{tpu_custom_call.1} parent=5 // pred_region
        %s192 = ssub.s32 %s17, 1
        %s193 = sand.u32 %s48, 1
        %s194 = scalar_lea.sflag [#allocation3], %s193
        %s195 = sand.u32 %s48, 1
        %s196 = smul.addr %s195, 16
        %s197 = scalar_lea.vmem [#allocation2], %s196
        // Predicated region
        $region29: #{tpu_custom_call.1} parent=27 // pred_check
          %p198 = pneg %p61
        $region30: #{tpu_custom_call.1} parent=27 // pred_check_branch
          %200 = sbr.rel (%p198) target = $region32
        $region31: #{tpu_custom_call.1} parent=27 // pred_region
          %201 = dma.done %s194, 256
        $region32: #{tpu_custom_call.1} parent=27 // pred_fallthru
          _
        %s202 = sand.u32 %s80, 1
        %s203 = scalar_lea.sflag [#allocation6], %s202
        %s204 = sand.u32 %s80, 1
        %s205 = smul.addr %s204, 16
        %s206 = scalar_lea.vmem [#allocation5], %s205
        // Predicated region
        $region33: #{tpu_custom_call.1} parent=27 // pred_check
          %p207 = pneg %p93
        $region34: #{tpu_custom_call.1} parent=27 // pred_check_branch
          %209 = sbr.rel (%p207) target = $region36
        $region35: #{tpu_custom_call.1} parent=27 // pred_region
          %210 = dma.done %s203, 256
        $region36: #{tpu_custom_call.1} parent=27 // pred_fallthru
          _
        %s211 = sand.u32 %s48, 1
        %s212 = scalar_lea.sflag [#allocation3], %s211
        %s213 = sand.u32 %s48, 1
        %s214 = smul.addr %s213, 16
        %s215 = scalar_lea.vmem [#allocation2], %s214
        %p216 = pneg %p61
        %p217 = pneg %p58
        %s218 = sand.u32 %s80, 1
        %s219 = scalar_lea.sflag [#allocation6], %s218
        %s220 = sand.u32 %s80, 1
        %s221 = smul.addr %s220, 16
        %s222 = scalar_lea.vmem [#allocation5], %s221
        %p223 = pneg %p93
        %p224 = pneg %p90
        %p225 = pneg %p119
        %p226 = pneg %p116
        %s227 = sand.u32 %s106, 1
        %s228 = scalar_lea.sflag [#allocation4], %s227
        %s229 = sand.u32 %s106, 1
        %s230 = smul.addr %s229, 8
        %s231 = scalar_lea.vmem [#allocation7], %s230
        %s232 = sadd.s32 %s26, %s27
        %p233 = scmp.lt.s32.totalorder %s232, 0
        %s234 = scalar_select %p233, %s232, 0
        %s235 = smul.u32 2, %s234
        %s236 = sadd.s32 %s26, %s27
        %p237 = scmp.lt.s32.totalorder %s236, 0
        %s238 = scalar_select %p237, %s236, 0
        %s239 = smul.u32 2, %s238
        %p240 = scmp.eq.s32.totalorder %s27, 0
        // Predicated region
        $region37: #{tpu_custom_call.1} parent=27 // pred_check
          %p241 = pneg %p240
        $region38: #{tpu_custom_call.1} parent=27 // pred_check_branch
          %243 = sbr.rel (%p241) target = $region40
        $region39: #{tpu_custom_call.1} parent=27 // pred_region
          %244 = vst [vmem:[%s231] sm:$0xff] 0.0
        $region40: #{tpu_custom_call.1} parent=27 // pred_fallthru
          _
        %v245 = vld [vmem:[%s197] sm:$0xff]
        %v246 = vld [vmem:[%s197 + $0x8] sm:$0xff]
        %v247 = vld [vmem:[%s206] sm:$0xff]
        %v248 = vld [vmem:[%s206 + $0x8] sm:$0xff]
        %v249 = vmax.f32 %v245, 0.0
        %v250 = vmax.f32 %v246, 0.0
        %v251 = vmul.f32 %v245, %v247
        %v252 = vmul.f32 %v246, %v248
        %v253 = vsub.f32 %v249, %v251
        %v254 = vsub.f32 %v250, %v252
        %v255 = vand.u32 2147483647, %v245
        %v256 = vand.u32 2147483647, %v246
        %v257 = vsub.f32 0.0, %v255
        %v258 = vsub.f32 0.0, %v256
        %v259 = vmul.f32 %v257, 1.442695
        %v260 = vpow.pop %v259
        %v261 = vmul.f32 %v258, 1.442695
        %v262 = vpow.pop %v261
        %v263 = vadd.f32 %v260, 1.0
        %v264 = vlog2.pop %v263
        %v265 = vmul.f32 %v264, 0.6931472
        %v266 = vmul.f32 -0.5, %v260
        %v267 = vadd.f32 %v266, 1.0
        %v268 = vmul.f32 %v267, %v260
        %v269 = vand.u32 2147483647, %v260
        %vm270 = vcmp.lt.f32.partialorder %v269, 0.0004427343
        %v271 = vsel %vm270, %v268, %v265
        %v272 = vadd.f32 %v262, 1.0
        %v273 = vlog2.pop %v272
        %v274 = vmul.f32 %v273, 0.6931472
        %v275 = vmul.f32 -0.5, %v262
        %v276 = vadd.f32 %v275, 1.0
        %v277 = vmul.f32 %v276, %v262
        %v278 = vand.u32 2147483647, %v262
        %vm279 = vcmp.lt.f32.partialorder %v278, 0.0004427343
        %v280 = vsel %vm279, %v277, %v274
        %v281 = vadd.f32 %v253, %v271
        %v282 = vadd.f32 %v254, %v280
        %v283 = vsub.f32 0.0, %v281
        %v284 = vsub.f32 0.0, %v282
        %v285 = vmul.f32 %v283, 1.442695
        %v286 = vpow.pop %v285
        %v287 = vmul.f32 %v284, 1.442695
        %v288 = vpow.pop %v287
        %v289 = vsub.f32 1.0, %v286
        %v290 = vsub.f32 1.0, %v288
        %v291 = vmul.f32 %v289, %v289
        %v292 = vmul.f32 %v290, %v290
        %v293 = vmul.f32 %v291, %v281
        %v294 = vmul.f32 %v292, %v282
        %s295 = sadd.s32 %s26, %s27
        %s296 = smul.u32 %s295, 2048
        %s297 = sadd.s32 %s296, 2048
        %p298 = scmp.le.s32.totalorder %s297, 2048
        // Predicated region
        $region41: #{tpu_custom_call.1} parent=27 // pred_check
          %p299 = pneg %p298
        $region42: #{tpu_custom_call.1} parent=27 // pred_check_branch
          %301 = sbr.rel (%p299) target = $region44
        $region43: #{tpu_custom_call.1} parent=27 // pred_region
          %v302 = vld [vmem:[%s231] sm:$0xff]
          %v303 = vadd.f32 %v293, %v294
          %v304 = vadd.f32 %v302, %v303
          %305 = vst [vmem:[%s231] sm:$0xff] %v304
        $region44: #{tpu_custom_call.1} parent=27 // pred_fallthru
          _
        %p306 = scmp.gt.s32.totalorder %s297, 2048
        // Predicated region
        $region45: #{tpu_custom_call.1} parent=27 // pred_check
          %p307 = pneg %p306
        $region46: #{tpu_custom_call.1} parent=27 // pred_check_branch
          %309 = sbr.rel (%p307) target = $region48
        $region47: #{tpu_custom_call.1} parent=27 // pred_region
          %v310 = vlaneseq
          %v311 = vshrl.u32 %v310, 7
          %v312 = vadd.s32 %v311, 8
          %v313 = vlaneseq
          %v314 = vand.u32 %v313, 127
          %v315 = vmul.u32 %v311, 128
          %v316 = vmul.u32 %v312, 128
          %v317 = vstv %s296
          %v318 = vadd.s32 %v317, %v315
          %v319 = vadd.s32 %v317, %v316
          %v320 = vadd.s32 %v318, %v314
          %v321 = vadd.s32 %v319, %v314
          %vm322 = vcmp.lt.s32.totalorder %v320, 2048
          %vm323 = vcmp.lt.s32.totalorder %v321, 2048
          %v324 = vsel %vm322, %v293, 0.0
          %v325 = vsel %vm323, %v294, 0.0
          %v326 = vld [vmem:[%s231] sm:$0xff]
          %v327 = vadd.f32 %v324, %v325
          %v328 = vadd.f32 %v326, %v327
          %329 = vst [vmem:[%s231] sm:$0xff] %v328
        $region48: #{tpu_custom_call.1} parent=27 // pred_fallthru
          _
        %s330 = sand.u32 %s106, 1
        %s331 = scalar_lea.sflag [#allocation4], %s330
        %s332 = sand.u32 %s106, 1
        %s333 = smul.addr %s332, 8
        %s334 = scalar_lea.vmem [#allocation7], %s333
        // Predicated region
        $region49: #{tpu_custom_call.1} parent=27 // pred_check
          %p335 = pneg %p116
        $region50: #{tpu_custom_call.1} parent=27 // pred_check_branch
          %337 = sbr.rel (%p335) target = $region52
        $region51: #{tpu_custom_call.1} parent=27 // pred_region
          %s339 = ssub.s32 128, 128
          %340 = vsyncadd %s331, %s339
          %s341 = smul.addr %s26, 128
          %s342 = scalar_lea.hbm %s2, %s341
          %s344 = sshll.u32 %s334, 4
          %s345 = int_to_ptr.vmem [resolvable:$true] %s344
          %347 = dma.vmem_to_hbm [thread:$0]  %s345, 128, %s342, %s331
        $region52: #{tpu_custom_call.1} parent=27 // pred_fallthru
          _
      $region28: #{tpu_custom_call.1} parent=5 // pred_fallthru
        _
      %p348 = scmp.le.s32.totalorder 2, %s17
      // Predicated region
      $region53: #{tpu_custom_call.1} parent=5 // pred_check
        %p349 = pneg %p348
      $region54: #{tpu_custom_call.1} parent=5 // pred_check_branch
        %351 = sbr.rel (%p349) target = $region56
      $region55: #{tpu_custom_call.1} parent=5 // pred_region
        %s352 = ssub.s32 %s17, 2
        // Predicated region
        $region57: #{tpu_custom_call.1} parent=55 // pred_check
          %p353 = pneg %p122
        $region58: #{tpu_custom_call.1} parent=55 // pred_check_branch
          %355 = sbr.rel (%p353) target = $region60
        $region59: #{tpu_custom_call.1} parent=55 // pred_region
          %s356 = sand.u32 %s107, 1
          %s357 = scalar_lea.sflag [#allocation4], %s356
          %s358 = sand.u32 %s107, 1
          %s359 = smul.addr %s358, 8
          %s360 = scalar_lea.vmem [#allocation7], %s359
          %361 = dma.done %s357, 128
        $region60: #{tpu_custom_call.1} parent=55 // pred_fallthru
          _
      $region56: #{tpu_custom_call.1} parent=5 // pred_fallthru
        _
    $region6: #{tpu_custom_call.1} parent=1 // loop_footer
      %s21 = sadd.s32 1, %s17
    $region7: #{tpu_custom_call.1} parent=1 // loop_footer_branch
      %16 = sbr.rel target = $region3
    $region8: #{tpu_custom_call.1} parent=1 // loop_exit
      _
    %362 = vsyncpa [#allocation3], 1
    %s363 = scalar_lea.sflag [#allocation3], 1
    %364 = vsyncpa %s363, 1
    %365 = vsyncpa [#allocation6], 1
    %s366 = scalar_lea.sflag [#allocation6], 1
    %367 = vsyncpa %s366, 1
    %368 = vsyncpa [#allocation4], 1
    %s369 = scalar_lea.sflag [#allocation4], 1
    %370 = vsyncpa %s369, 1

</llo_original>
